<compile_context>
chip_gen: v6e
topology: v6e:2x2x1
jax: 0.10.0
libtpu: 0.0.40
codegen_flags: <defaults>
</compile_context>

<pallas_src>
import jax
import jax.numpy as jnp
from jax.experimental import pallas as pl
from jax.experimental.pallas import tpu as pltpu


def dnn_kernel(xT_ref, w1T_ref, b1_ref, w2T_ref, b2_ref, w3_ref, o_ref):
    # xT_ref: (S, Bt) bf16  -- batch on the lane axis
    # w1T_ref: (H, S) bf16, w2T_ref: (H, H) bf16
    # b1_ref/b2_ref/w3_ref: (H, 1) f32
    xT = xT_ref[...]                                                      # (S, Bt)
    h1 = jnp.dot(w1T_ref[...], xT, preferred_element_type=jnp.float32)   # (H, Bt) f32
    h1 = jnp.maximum(h1 + b1_ref[...], 0.0)                              # bias (H,1) lane-bcast
    h2 = jnp.dot(w2T_ref[...], h1.astype(w2T_ref.dtype),
                 preferred_element_type=jnp.float32)                     # (H, Bt) f32
    h2 = jnp.maximum(h2 + b2_ref[...], 0.0)
    # Final Linear(H, 1, bias=False) as VPU multiply + sublane reduction (no N=1 MXU op).
    y = jnp.sum(h2 * w3_ref[...], axis=0, keepdims=True)                 # (1, Bt) f32
    # torch.prod over a size-1 dim is the identity.
    o_ref[...] = jnp.tanh(y)                                             # lane-dense store


def _round_up(x, m):
    return ((x + m - 1) // m) * m


def dnn_forward(x, w1, b1, w2, b2, w3, *, b_tile=512):
    """x: (B, S) f32; w1: (S, H); b1: (1, H); w2: (H, H); b2: (1, H); w3: (H, 1).

    Weights are stored as (in, out), i.e. already transposed vs. torch Linear.
    Returns (B,) f32 = tanh(relu(relu(x@w1+b1)@w2+b2) @ w3).
    """
    B, S = x.shape
    H = w1.shape[1]

    # Batch tile: multiple of 128 so the output block is lane-dense; capped at b_tile,
    # which is sized well inside v7x's 64 MiB VMEM (f32 activations dominate: Bt*H*4B).
    Bt = min(b_tile, _round_up(B, 128))
    Bp = _round_up(B, Bt)
    if Bp != B:
        x = jnp.pad(x, ((0, Bp - B), (0, 0)))  # padded rows are sliced off below

    # Transposed, lane-dense layout: batch on the 128-lane axis everywhere.
    xT = x.T.astype(jnp.bfloat16)             # (S, Bp)
    w1T = w1.T.astype(jnp.bfloat16)           # (H, S)
    w2T = w2.T.astype(jnp.bfloat16)           # (H, H)
    b1c = b1.reshape(H, 1).astype(jnp.float32)
    b2c = b2.reshape(H, 1).astype(jnp.float32)
    w3c = w3.reshape(H, 1).astype(jnp.float32)

    out = pl.pallas_call(
        dnn_kernel,
        out_shape=jax.ShapeDtypeStruct((1, Bp), jnp.float32),
        grid=(Bp // Bt,),
        in_specs=[
            pl.BlockSpec((S, Bt), lambda i: (0, i)),    # x tile: pipelined per grid step
            pl.BlockSpec((H, S), lambda i: (0, 0)),     # weights: constant block -> resident
            pl.BlockSpec((H, 1), lambda i: (0, 0)),
            pl.BlockSpec((H, H), lambda i: (0, 0)),
            pl.BlockSpec((H, 1), lambda i: (0, 0)),
            pl.BlockSpec((H, 1), lambda i: (0, 0)),
        ],
        out_specs=pl.BlockSpec((1, Bt), lambda i: (0, i)),  # lane-dense output slab
        compiler_params=pltpu.CompilerParams(
            dimension_semantics=("parallel",),  # shard batch tiles across TCs on v7x
        ),
    )(xT, w1T, b1c, w2T, b2c, w3c)

    # (1, Bp) -> (B,), matching torch.tanh(y.squeeze(1))
    return out[0, :B]


def init_params(key, seq_len, hidden):
    k1, k2, k3, k4, k5 = jax.random.split(key, 5)
    # Deterministic synthetic init (uniform, roughly torch-Linear-like scale).
    w1 = jax.random.uniform(k1, (seq_len, hidden), jnp.float32, -1.0, 1.0) / jnp.sqrt(seq_len)
    b1 = jax.random.uniform(k2, (1, hidden), jnp.float32, -1.0, 1.0) / jnp.sqrt(seq_len)
    w2 = jax.random.uniform(k3, (hidden, hidden), jnp.float32, -1.0, 1.0) / jnp.sqrt(hidden)
    b2 = jax.random.uniform(k4, (1, hidden), jnp.float32, -1.0, 1.0) / jnp.sqrt(hidden)
    w3 = jax.random.uniform(k5, (hidden, 1), jnp.float32, -1.0, 1.0) / jnp.sqrt(hidden)
    return w1, b1, w2, b2, w3


if __name__ == "__main__":
    key = jax.random.PRNGKey(0)
    batch, seq_len, hidden = 8, 8, 64  # args.seq_length -> 8, hidden_layer_size=64 (fixed)

    kx, kp = jax.random.split(key)
    x = jax.random.normal(kx, (batch, seq_len), jnp.float32)
    w1, b1, w2, b2, w3 = init_params(kp, seq_len, hidden)

    out = jax.block_until_ready(dnn_forward(x, w1, b1, w2, b2, w3))

    # Pure-JAX reference with the same bf16-matmul / f32-accumulate math as the kernel.
    xb, w1b, w2b = (a.astype(jnp.bfloat16) for a in (x, w1, w2))
    h1 = jnp.maximum(jnp.dot(xb, w1b, preferred_element_type=jnp.float32) + b1, 0.0)
    h2 = jnp.maximum(jnp.dot(h1.astype(jnp.bfloat16), w2b,
                             preferred_element_type=jnp.float32) + b2, 0.0)
    ref = jnp.tanh(h2 @ w3)[:, 0]  # prod over size-1 dim is identity

    assert out.shape == (batch,)
    assert jnp.allclose(out, ref, atol=1e-3, rtol=1e-3), float(jnp.max(jnp.abs(out - ref)))

    print("KERNEL_OK")
</pallas_src>

<mosaic_0001>
module attributes {stable_mosaic.version = 11 : i64} {
  func.func @dnn_kernel(%arg0: i32, %arg1: memref<8x128xbf16, #tpu.memory_space<vmem>>, %arg2: memref<64x8xbf16, #tpu.memory_space<vmem>>, %arg3: memref<64x1xf32, #tpu.memory_space<vmem>>, %arg4: memref<64x64xbf16, #tpu.memory_space<vmem>>, %arg5: memref<64x1xf32, #tpu.memory_space<vmem>>, %arg6: memref<64x1xf32, #tpu.memory_space<vmem>>, %arg7: memref<1x128xf32, #tpu.memory_space<vmem>>) attributes {dimension_semantics = [#tpu.dimension_semantics<parallel>], iteration_bounds = array<i64: 1>, scalar_prefetch = 0 : i64, scratch_operands = 0 : i64, tpu.core_type = #tpu.core_type<tc>, window_params = [{transform_indices = @transform_0, window_bounds = array<i64: 8, 128>}, {pipeline_mode = #tpu.pipeline_mode<synchronous>, transform_indices = @transform_1, window_bounds = array<i64: 64, 8>}, {pipeline_mode = #tpu.pipeline_mode<synchronous>, transform_indices = @transform_2, window_bounds = array<i64: 64, 1>}, {pipeline_mode = #tpu.pipeline_mode<synchronous>, transform_indices = @transform_3, window_bounds = array<i64: 64, 64>}, {pipeline_mode = #tpu.pipeline_mode<synchronous>, transform_indices = @transform_4, window_bounds = array<i64: 64, 1>}, {pipeline_mode = #tpu.pipeline_mode<synchronous>, transform_indices = @transform_5, window_bounds = array<i64: 64, 1>}, {transform_indices = @transform_6, window_bounds = array<i64: 1, 128>}]} {
    %c0 = arith.constant 0 : index
    %c0_0 = arith.constant 0 : index
    %0 = vector.load %arg1[%c0, %c0_0] : memref<8x128xbf16, #tpu.memory_space<vmem>>, vector<8x128xbf16>
    %c0_1 = arith.constant 0 : index
    %c0_2 = arith.constant 0 : index
    %1 = vector.load %arg2[%c0_1, %c0_2] : memref<64x8xbf16, #tpu.memory_space<vmem>>, vector<64x8xbf16>
    %cst = arith.constant dense<0.000000e+00> : vector<64x128xf32>
    %2 = tpu.matmul %1, %0, %cst {dimension_numbers = #tpu.dot_dimension_numbers<[1], [0], [0], [1], [0, 0, 1, 1], [], []>} : vector<64x8xbf16>, vector<8x128xbf16>, vector<64x128xf32> -> vector<64x128xf32>
    %c0_3 = arith.constant 0 : index
    %c0_4 = arith.constant 0 : index
    %3 = vector.load %arg3[%c0_3, %c0_4] : memref<64x1xf32, #tpu.memory_space<vmem>>, vector<64x1xf32>
    %4 = vector.broadcast %3 : vector<64x1xf32> to vector<64x128xf32>
    %5 = arith.addf %2, %4 : vector<64x128xf32>
    %cst_5 = arith.constant 0.000000e+00 : f32
    %6 = vector.broadcast %cst_5 : f32 to vector<64x128xf32>
    %7 = arith.maximumf %5, %6 : vector<64x128xf32>
    %c0_6 = arith.constant 0 : index
    %c0_7 = arith.constant 0 : index
    %8 = vector.load %arg4[%c0_6, %c0_7] : memref<64x64xbf16, #tpu.memory_space<vmem>>, vector<64x64xbf16>
    %9 = arith.truncf %7 : vector<64x128xf32> to vector<64x128xbf16>
    %cst_8 = arith.constant dense<0.000000e+00> : vector<64x128xf32>
    %10 = tpu.matmul %8, %9, %cst_8 {dimension_numbers = #tpu.dot_dimension_numbers<[1], [0], [0], [1], [0, 0, 1, 1], [], []>} : vector<64x64xbf16>, vector<64x128xbf16>, vector<64x128xf32> -> vector<64x128xf32>
    %c0_9 = arith.constant 0 : index
    %c0_10 = arith.constant 0 : index
    %11 = vector.load %arg5[%c0_9, %c0_10] : memref<64x1xf32, #tpu.memory_space<vmem>>, vector<64x1xf32>
    %12 = vector.broadcast %11 : vector<64x1xf32> to vector<64x128xf32>
    %13 = arith.addf %10, %12 : vector<64x128xf32>
    %cst_11 = arith.constant 0.000000e+00 : f32
    %14 = vector.broadcast %cst_11 : f32 to vector<64x128xf32>
    %15 = arith.maximumf %13, %14 : vector<64x128xf32>
    %c0_12 = arith.constant 0 : index
    %c0_13 = arith.constant 0 : index
    %16 = vector.load %arg6[%c0_12, %c0_13] : memref<64x1xf32, #tpu.memory_space<vmem>>, vector<64x1xf32>
    %17 = vector.broadcast %16 : vector<64x1xf32> to vector<64x128xf32>
    %18 = arith.mulf %15, %17 : vector<64x128xf32>
    %cst_14 = arith.constant dense<0.000000e+00> : vector<128xf32>
    %19 = vector.multi_reduction <add>, %18, %cst_14 [0] : vector<64x128xf32> to vector<128xf32>
    %20 = vector.shape_cast %19 : vector<128xf32> to vector<1x128xf32>
    %21 = math.tanh %20 : vector<1x128xf32>
    %c0_15 = arith.constant 0 : index
    %c0_16 = arith.constant 0 : index
    %22 = vector.load %arg7[%c0_15, %c0_16] : memref<1x128xf32, #tpu.memory_space<vmem>>, vector<1x128xf32>
    tpu.vector_store %arg7[%c0_15, %c0_16], %21 {strides = array<i32>} : memref<1x128xf32, #tpu.memory_space<vmem>>, vector<1x128xf32>,
    return
  }
  func.func @transform_0(%arg0: i32) -> (i32, i32) {
    %c0_i32 = arith.constant 0 : i32
    %c0_i32_0 = arith.constant 0 : i32
    return %c0_i32, %arg0 : i32, i32
  }
  func.func @transform_1(%arg0: i32) -> (i32, i32) {
    %c0_i32 = arith.constant 0 : i32
    %c0_i32_0 = arith.constant 0 : i32
    %c0_i32_1 = arith.constant 0 : i32
    return %c0_i32, %c0_i32_0 : i32, i32
  }
  func.func @transform_2(%arg0: i32) -> (i32, i32) {
    %c0_i32 = arith.constant 0 : i32
    %c0_i32_0 = arith.constant 0 : i32
    %c0_i32_1 = arith.constant 0 : i32
    return %c0_i32, %c0_i32_0 : i32, i32
  }
  func.func @transform_3(%arg0: i32) -> (i32, i32) {
    %c0_i32 = arith.constant 0 : i32
    %c0_i32_0 = arith.constant 0 : i32
    %c0_i32_1 = arith.constant 0 : i32
    return %c0_i32, %c0_i32_0 : i32, i32
  }
  func.func @transform_4(%arg0: i32) -> (i32, i32) {
    %c0_i32 = arith.constant 0 : i32
    %c0_i32_0 = arith.constant 0 : i32
    %c0_i32_1 = arith.constant 0 : i32
    return %c0_i32, %c0_i32_0 : i32, i32
  }
  func.func @transform_5(%arg0: i32) -> (i32, i32) {
    %c0_i32 = arith.constant 0 : i32
    %c0_i32_0 = arith.constant 0 : i32
    %c0_i32_1 = arith.constant 0 : i32
    return %c0_i32, %c0_i32_0 : i32, i32
  }
  func.func @transform_6(%arg0: i32) -> (i32, i32) {
    %c0_i32 = arith.constant 0 : i32
    %c0_i32_0 = arith.constant 0 : i32
    return %c0_i32, %arg0 : i32, i32
  }
}

</mosaic_0001>

<llo_original>
// kernel: tpu_custom_call.1
$region0: #{tpu_custom_call.1}
  #allocation0 [shape = 'u32[]', space=smem, size = 0x4, offset = 0x4, fixed_abs, tag = 'smem constant byte address 0x4 - core index']
  #allocation1 [shape = 'u32[144,128]{1,0:T(1,128)}', space=vmem, size = 0x12000, scoped, tag = 'internal scratch']
  %s0 = inlined_call_operand.vmem [shape: bf16[8,128], index: 0, kind: input, shape index: {}]
  %s1 = inlined_call_operand.vmem [shape: bf16[64,8], index: 1, kind: input, shape index: {}]
  %s2 = inlined_call_operand.vmem [shape: f32[64,1], index: 2, kind: input, shape index: {}]
  %s3 = inlined_call_operand.vmem [shape: bf16[64,64], index: 3, kind: input, shape index: {}]
  %s4 = inlined_call_operand.vmem [shape: f32[64,1], index: 4, kind: input, shape index: {}]
  %s5 = inlined_call_operand.vmem [shape: f32[64,1], index: 5, kind: input, shape index: {}]
  %s6 = inlined_call_operand.hbm [shape: f32[1,128], index: 6, kind: output, shape index: {}]
  %s7 = sld [smem:[#allocation0]]
  $region34: #{tpu_custom_call.1} parent=0
    _
  %s9 = ssub.s32 1, %s7
  %s10 = scalar_select 0, %s9, %s7
  $region1: #{tpu_custom_call.1} parent=0
    #allocation2 [shape = 'u8[512]{0}', space=vmem, size = 0x400, scoped, tag = 'output window, operand 0, single buffered']
    #allocation3 [shape = 's32[1]{0}', space=sflag, size = 0x4, scoped, tag = 'scoped memory for tpu_custom_call.1']
    %11 = vsyncpa [#allocation3], 0
    // Predicated region
    $region2: #{tpu_custom_call.1} parent=1 // pred_check
      _
    $region3: #{tpu_custom_call.1} parent=1 // pred_check_branch
      %13 = sbr.rel (0) target = $region5
    $region4: #{tpu_custom_call.1} parent=1 // pred_region
      _
    $region5: #{tpu_custom_call.1} parent=1 // pred_fallthru
      _
    // Predicated region
    $region6: #{tpu_custom_call.1} parent=1 // pred_check
      _
    $region7: #{tpu_custom_call.1} parent=1 // pred_check_branch
      %15 = sbr.rel (0) target = $region9
    $region8: #{tpu_custom_call.1} parent=1 // pred_region
      _
    $region9: #{tpu_custom_call.1} parent=1 // pred_fallthru
      _
    // Predicated region
    $region10: #{tpu_custom_call.1} parent=1 // pred_check
      _
    $region11: #{tpu_custom_call.1} parent=1 // pred_check_branch
      %17 = sbr.rel (0) target = $region13
    $region12: #{tpu_custom_call.1} parent=1 // pred_region
      _
    $region13: #{tpu_custom_call.1} parent=1 // pred_fallthru
      _
    // Predicated region
    $region14: #{tpu_custom_call.1} parent=1 // pred_check
      _
    $region15: #{tpu_custom_call.1} parent=1 // pred_check_branch
      %19 = sbr.rel (0) target = $region17
    $region16: #{tpu_custom_call.1} parent=1 // pred_region
      _
    $region17: #{tpu_custom_call.1} parent=1 // pred_fallthru
      _
    // Predicated region
    $region18: #{tpu_custom_call.1} parent=1 // pred_check
      _
    $region19: #{tpu_custom_call.1} parent=1 // pred_check_branch
      %21 = sbr.rel (0) target = $region21
    $region20: #{tpu_custom_call.1} parent=1 // pred_region
      _
    $region21: #{tpu_custom_call.1} parent=1 // pred_fallthru
      _
    // Predicated region
    $region22: #{tpu_custom_call.1} parent=1 // pred_check
      _
    $region23: #{tpu_custom_call.1} parent=1 // pred_check_branch
      %23 = sbr.rel (0) target = $region25
    $region24: #{tpu_custom_call.1} parent=1 // pred_region
      _
    $region25: #{tpu_custom_call.1} parent=1 // pred_fallthru
      _
    %v25 = vld [vmem:[%s0] sm:$0xf]
    %v26 = vld [vmem:[%s1] sm:$0xf]
    %v27 = vld [vmem:[%s1 + $0x4] sm:$0xf]
    %v28 = vld [vmem:[%s1 + $0x8] sm:$0xf]
    %v29 = vld [vmem:[%s1 + $0xc] sm:$0xf]
    %v30 = vld [vmem:[%s1 + $0x10] sm:$0xf]
    %v31 = vld [vmem:[%s1 + $0x14] sm:$0xf]
    %v32 = vld [vmem:[%s1 + $0x18] sm:$0xf]
    %v33 = vld [vmem:[%s1 + $0x1c] sm:$0xf]
    %v34 = vld [vmem:[%s2] sm:$0xff]
    %v35 = vld [vmem:[%s2 + $0x8] sm:$0xff]
    %v36 = vld [vmem:[%s2 + $0x10] sm:$0xff]
    %v37 = vld [vmem:[%s2 + $0x18] sm:$0xff]
    %v38 = vld [vmem:[%s2 + $0x20] sm:$0xff]
    %v39 = vld [vmem:[%s2 + $0x28] sm:$0xff]
    %v40 = vld [vmem:[%s2 + $0x30] sm:$0xff]
    %v41 = vld [vmem:[%s2 + $0x38] sm:$0xff]
    %43 = vset.pattern.permute.xlu0 0
    %44 = vperm.xlu0 %43, %v34
    %v45 = vpop.permute.xlu0 %44
    %48 = vset.pattern.permute.xlu0 0
    %49 = vperm.xlu0 %48, %v35
    %v50 = vpop.permute.xlu0 %49
    %53 = vset.pattern.permute.xlu0 0
    %54 = vperm.xlu0 %53, %v36
    %v55 = vpop.permute.xlu0 %54
    %58 = vset.pattern.permute.xlu0 0
    %59 = vperm.xlu0 %58, %v37
    %v60 = vpop.permute.xlu0 %59
    %63 = vset.pattern.permute.xlu0 0
    %64 = vperm.xlu0 %63, %v38
    %v65 = vpop.permute.xlu0 %64
    %68 = vset.pattern.permute.xlu0 0
    %69 = vperm.xlu0 %68, %v39
    %v70 = vpop.permute.xlu0 %69
    %73 = vset.pattern.permute.xlu0 0
    %74 = vperm.xlu0 %73, %v40
    %v75 = vpop.permute.xlu0 %74
    %78 = vset.pattern.permute.xlu0 0
    %79 = vperm.xlu0 %78, %v41
    %v80 = vpop.permute.xlu0 %79
    %v90 = vunpack.c.l.b16 %v26
    %v91 = vunpack.c.l.b16 %v27
    %v92 = vunpack.c.l.b16 %v28
    %v93 = vunpack.c.l.b16 %v29
    %v94 = vunpack.c.l.b16 %v30
    %v95 = vunpack.c.l.b16 %v31
    %v96 = vunpack.c.l.b16 %v32
    %v97 = vunpack.c.l.b16 %v33
    %v98 = vpack.c.b16 %v91, %v90
    %v99 = vpack.c.b16 %v93, %v92
    %v100 = vpack.c.b16 %v95, %v94
    %v101 = vpack.c.b16 %v97, %v96
    %vm102 = vcmask 64512
    %v104 = vsel %vm102, %v98, 0
    %v107 = vsel %vm102, %v99, 0
    %v110 = vsel %vm102, %v100, 0
    %v113 = vsel %vm102, %v101, 0
    %vm115 = vcmask 1043456
    %v117 = vsel %vm115, %v25, 0
    %119 = vmatprep.subr.bf16.mxu0 0
    %120 = vmatpush1.bf16.msra.mxu0 0
    %121 = vmatprep.subr.bf16.mxu0 0
    %122 = vmatpush1.bf16.msra.mxu0 0
    %123 = vmatprep.subr.bf16.mxu0 0
    %124 = vmatpush1.bf16.msra.mxu0 0
    %125 = vmatprep.subr.bf16.mxu0 0
    %126 = vmatpush1.bf16.msra.mxu0 0
    %127 = vmatprep.subr.bf16.mxu0 0
    %128 = vmatpush1.bf16.msra.mxu0 0
    %129 = vmatprep.subr.bf16.mxu0 0
    %130 = vmatpush1.bf16.msra.mxu0 0
    %131 = vmatprep.subr.bf16.mxu0 0
    %132 = vmatpush1.bf16.msra.mxu0 0
    %133 = vmatprep.subr.bf16.mxu0 0
    %134 = vmatpush1.bf16.msra.mxu0 %v117
    %135 = vmatprep.subr.bf16.mxu0 0
    %136 = vmatpush2.bf16.msra.mxu0 0
    %137 = vmatprep.subr.bf16.mxu0 0
    %138 = vmatpush2.bf16.msra.mxu0 0
    %139 = vmatprep.subr.bf16.mxu0 0
    %140 = vmatpush2.bf16.msra.mxu0 0
    %141 = vmatprep.subr.bf16.mxu0 0
    %142 = vmatpush2.bf16.msra.mxu0 0
    %143 = vmatprep.subr.bf16.mxu0 0
    %144 = vmatpush2.bf16.msra.mxu0 0
    %145 = vmatprep.subr.bf16.mxu0 0
    %146 = vmatpush2.bf16.msra.mxu0 0
    %147 = vmatprep.subr.bf16.mxu0 0
    %148 = vmatpush2.bf16.msra.mxu0 0
    %149 = vmatprep.subr.bf16.mxu0 0
    %150 = vmatpush2.bf16.msra.mxu0 0
    %151 = vmatprep.mubr.bf16.mxu0 0
    %152 = vmatmul.mubr.bf16.gmra.mxu0 %v104
    %v153 = vpop.f32.mrf.mxu0
    %v154 = vadd.f32 %v45, %v153
    %v155 = vpop.f32.mrf.mxu0
    %v156 = vpop.f32.mrf.mxu0
    %v157 = vadd.f32 %v50, %v156
    %v158 = vpop.f32.mrf.mxu0
    %159 = vmatprep.mubr.bf16.mxu0 0
    %160 = vmatmul.mubr.bf16.gmra.mxu0 %v107
    %v161 = vpop.f32.mrf.mxu0
    %v162 = vadd.f32 %v55, %v161
    %v163 = vpop.f32.mrf.mxu0
    %v164 = vpop.f32.mrf.mxu0
    %v165 = vadd.f32 %v60, %v164
    %v166 = vpop.f32.mrf.mxu0
    %167 = vmatprep.mubr.bf16.mxu0 0
    %168 = vmatmul.mubr.bf16.gmra.mxu0 %v110
    %v169 = vpop.f32.mrf.mxu0
    %v170 = vadd.f32 %v65, %v169
    %v171 = vpop.f32.mrf.mxu0
    %v172 = vpop.f32.mrf.mxu0
    %v173 = vadd.f32 %v70, %v172
    %v174 = vpop.f32.mrf.mxu0
    %175 = vmatprep.mubr.bf16.mxu0 0
    %176 = vmatmul.mubr.bf16.gmra.mxu0 %v113
    %v177 = vpop.f32.mrf.mxu0
    %v178 = vadd.f32 %v75, %v177
    %v179 = vpop.f32.mrf.mxu0
    %v180 = vpop.f32.mrf.mxu0
    %v181 = vadd.f32 %v80, %v180
    %v182 = vpop.f32.mrf.mxu0
    %183 = vdwg.mxu0
    %v184 = vmax.f32 %v154, 0.0
    %v185 = vmax.f32 %v157, 0.0
    %v186 = vmax.f32 %v162, 0.0
    %v187 = vmax.f32 %v165, 0.0
    %v188 = vmax.f32 %v170, 0.0
    %v189 = vmax.f32 %v173, 0.0
    %v190 = vmax.f32 %v178, 0.0
    %v191 = vmax.f32 %v181, 0.0
    %v192 = vld [vmem:[%s3] sm:$0xf]
    %v193 = vld [vmem:[%s3 + $0x4] sm:$0xf]
    %v194 = vld [vmem:[%s3 + $0x8] sm:$0xf]
    %v195 = vld [vmem:[%s3 + $0xc] sm:$0xf]
    %v196 = vld [vmem:[%s3 + $0x10] sm:$0xf]
    %v197 = vld [vmem:[%s3 + $0x14] sm:$0xf]
    %v198 = vld [vmem:[%s3 + $0x18] sm:$0xf]
    %v199 = vld [vmem:[%s3 + $0x1c] sm:$0xf]
    %v200 = vpack.c.bf16 %v185, %v184
    %v201 = vpack.c.bf16 %v187, %v186
    %v202 = vpack.c.bf16 %v189, %v188
    %v203 = vpack.c.bf16 %v191, %v190
    %v204 = vld [vmem:[%s4] sm:$0xff]
    %v205 = vld [vmem:[%s4 + $0x8] sm:$0xff]
    %v206 = vld [vmem:[%s4 + $0x10] sm:$0xff]
    %v207 = vld [vmem:[%s4 + $0x18] sm:$0xff]
    %v208 = vld [vmem:[%s4 + $0x20] sm:$0xff]
    %v209 = vld [vmem:[%s4 + $0x28] sm:$0xff]
    %v210 = vld [vmem:[%s4 + $0x30] sm:$0xff]
    %v211 = vld [vmem:[%s4 + $0x38] sm:$0xff]
    %213 = vset.pattern.permute.xlu0 0
    %214 = vperm.xlu0 %213, %v204
    %v215 = vpop.permute.xlu0 %214
    %218 = vset.pattern.permute.xlu0 0
    %219 = vperm.xlu0 %218, %v205
    %v220 = vpop.permute.xlu0 %219
    %223 = vset.pattern.permute.xlu0 0
    %224 = vperm.xlu0 %223, %v206
    %v225 = vpop.permute.xlu0 %224
    %228 = vset.pattern.permute.xlu0 0
    %229 = vperm.xlu0 %228, %v207
    %v230 = vpop.permute.xlu0 %229
    %233 = vset.pattern.permute.xlu0 0
    %234 = vperm.xlu0 %233, %v208
    %v235 = vpop.permute.xlu0 %234
    %238 = vset.pattern.permute.xlu0 0
    %239 = vperm.xlu0 %238, %v209
    %v240 = vpop.permute.xlu0 %239
    %243 = vset.pattern.permute.xlu0 0
    %244 = vperm.xlu0 %243, %v210
    %v245 = vpop.permute.xlu0 %244
    %248 = vset.pattern.permute.xlu0 0
    %249 = vperm.xlu0 %248, %v211
    %v250 = vpop.permute.xlu0 %249
    %v260 = vunpack.c.l.b16 %v192
    %v261 = vunpack.c.l.b16 %v193
    %v262 = vunpack.c.l.b16 %v194
    %v263 = vunpack.c.l.b16 %v195
    %v264 = vunpack.c.l.b16 %v196
    %v265 = vunpack.c.l.b16 %v197
    %v266 = vunpack.c.l.b16 %v198
    %v267 = vunpack.c.l.b16 %v199
    %v268 = vpack.c.b16 %v261, %v260
    %v269 = vpack.c.b16 %v263, %v262
    %v270 = vpack.c.b16 %v265, %v264
    %v271 = vpack.c.b16 %v267, %v266
    %vm272 = vcmask 523264
    %v274 = vsel %vm272, %v268, 0
    %v277 = vsel %vm272, %v269, 0
    %v280 = vsel %vm272, %v270, 0
    %v283 = vsel %vm272, %v271, 0
    %285 = vmatprep.subr.bf16.mxu0 0
    %286 = vmatpush1.bf16.msra.mxu0 0
    %287 = vmatprep.subr.bf16.mxu0 0
    %288 = vmatpush1.bf16.msra.mxu0 0
    %289 = vmatprep.subr.bf16.mxu0 0
    %290 = vmatpush1.bf16.msra.mxu0 0
    %291 = vmatprep.subr.bf16.mxu0 0
    %292 = vmatpush1.bf16.msra.mxu0 0
    %293 = vmatprep.subr.bf16.mxu0 0
    %294 = vmatpush1.bf16.msra.mxu0 %v203
    %295 = vmatprep.subr.bf16.mxu0 0
    %296 = vmatpush1.bf16.msra.mxu0 %v202
    %297 = vmatprep.subr.bf16.mxu0 0
    %298 = vmatpush1.bf16.msra.mxu0 %v201
    %299 = vmatprep.subr.bf16.mxu0 0
    %300 = vmatpush1.bf16.msra.mxu0 %v200
    %301 = vmatprep.subr.bf16.mxu0 0
    %302 = vmatpush2.bf16.msra.mxu0 0
    %303 = vmatprep.subr.bf16.mxu0 0
    %304 = vmatpush2.bf16.msra.mxu0 0
    %305 = vmatprep.subr.bf16.mxu0 0
    %306 = vmatpush2.bf16.msra.mxu0 0
    %307 = vmatprep.subr.bf16.mxu0 0
    %308 = vmatpush2.bf16.msra.mxu0 0
    %309 = vmatprep.subr.bf16.mxu0 0
    %310 = vmatpush2.bf16.msra.mxu0 0
    %311 = vmatprep.subr.bf16.mxu0 0
    %312 = vmatpush2.bf16.msra.mxu0 0
    %313 = vmatprep.subr.bf16.mxu0 0
    %314 = vmatpush2.bf16.msra.mxu0 0
    %315 = vmatprep.subr.bf16.mxu0 0
    %316 = vmatpush2.bf16.msra.mxu0 0
    %317 = vmatprep.mubr.bf16.mxu0 0
    %318 = vmatmul.mubr.bf16.gmra.mxu0 %v274
    %v319 = vpop.f32.mrf.mxu0
    %v320 = vadd.f32 %v215, %v319
    %v321 = vpop.f32.mrf.mxu0
    %v322 = vpop.f32.mrf.mxu0
    %v323 = vadd.f32 %v220, %v322
    %v324 = vpop.f32.mrf.mxu0
    %325 = vmatprep.mubr.bf16.mxu0 0
    %326 = vmatmul.mubr.bf16.gmra.mxu0 %v277
    %v327 = vpop.f32.mrf.mxu0
    %v328 = vadd.f32 %v225, %v327
    %v329 = vpop.f32.mrf.mxu0
    %v330 = vpop.f32.mrf.mxu0
    %v331 = vadd.f32 %v230, %v330
    %v332 = vpop.f32.mrf.mxu0
    %333 = vmatprep.mubr.bf16.mxu0 0
    %334 = vmatmul.mubr.bf16.gmra.mxu0 %v280
    %v335 = vpop.f32.mrf.mxu0
    %v336 = vadd.f32 %v235, %v335
    %v337 = vpop.f32.mrf.mxu0
    %v338 = vpop.f32.mrf.mxu0
    %v339 = vadd.f32 %v240, %v338
    %v340 = vpop.f32.mrf.mxu0
    %341 = vmatprep.mubr.bf16.mxu0 0
    %342 = vmatmul.mubr.bf16.gmra.mxu0 %v283
    %v343 = vpop.f32.mrf.mxu0
    %v344 = vadd.f32 %v245, %v343
    %v345 = vpop.f32.mrf.mxu0
    %v346 = vpop.f32.mrf.mxu0
    %v347 = vadd.f32 %v250, %v346
    %v348 = vpop.f32.mrf.mxu0
    %349 = vdwg.mxu0
    %v350 = vmax.f32 %v320, 0.0
    %v351 = vmax.f32 %v323, 0.0
    %v352 = vmax.f32 %v328, 0.0
    %v353 = vmax.f32 %v331, 0.0
    %v354 = vmax.f32 %v336, 0.0
    %v355 = vmax.f32 %v339, 0.0
    %v356 = vmax.f32 %v344, 0.0
    %v357 = vmax.f32 %v347, 0.0
    %v358 = vld [vmem:[%s5] sm:$0xff]
    %v359 = vld [vmem:[%s5 + $0x8] sm:$0xff]
    %v360 = vld [vmem:[%s5 + $0x10] sm:$0xff]
    %v361 = vld [vmem:[%s5 + $0x18] sm:$0xff]
    %v362 = vld [vmem:[%s5 + $0x20] sm:$0xff]
    %v363 = vld [vmem:[%s5 + $0x28] sm:$0xff]
    %v364 = vld [vmem:[%s5 + $0x30] sm:$0xff]
    %v365 = vld [vmem:[%s5 + $0x38] sm:$0xff]
    %367 = vset.pattern.permute.xlu0 0
    %368 = vperm.xlu0 %367, %v358
    %v369 = vpop.permute.xlu0 %368
    %372 = vset.pattern.permute.xlu0 0
    %373 = vperm.xlu0 %372, %v359
    %v374 = vpop.permute.xlu0 %373
    %377 = vset.pattern.permute.xlu0 0
    %378 = vperm.xlu0 %377, %v360
    %v379 = vpop.permute.xlu0 %378
    %382 = vset.pattern.permute.xlu0 0
    %383 = vperm.xlu0 %382, %v361
    %v384 = vpop.permute.xlu0 %383
    %387 = vset.pattern.permute.xlu0 0
    %388 = vperm.xlu0 %387, %v362
    %v389 = vpop.permute.xlu0 %388
    %392 = vset.pattern.permute.xlu0 0
    %393 = vperm.xlu0 %392, %v363
    %v394 = vpop.permute.xlu0 %393
    %397 = vset.pattern.permute.xlu0 0
    %398 = vperm.xlu0 %397, %v364
    %v399 = vpop.permute.xlu0 %398
    %402 = vset.pattern.permute.xlu0 0
    %403 = vperm.xlu0 %402, %v365
    %v404 = vpop.permute.xlu0 %403
    %v406 = vmul.f32 %v350, %v369
    %v407 = vmul.f32 %v351, %v374
    %v408 = vmul.f32 %v352, %v379
    %v409 = vmul.f32 %v353, %v384
    %v410 = vmul.f32 %v354, %v389
    %v411 = vmul.f32 %v355, %v394
    %v412 = vmul.f32 %v356, %v399
    %v413 = vmul.f32 %v357, %v404
    %v414 = vadd.f32 %v406, %v407
    %v415 = vadd.f32 %v414, %v408
    %v416 = vadd.f32 %v415, %v409
    %v417 = vadd.f32 %v416, %v410
    %v418 = vadd.f32 %v417, %v411
    %v419 = vadd.f32 %v418, %v412
    %v420 = vadd.f32 %v419, %v413
    %v421 = vrot.slane %v420, 4
    %v422 = vadd.f32 %v420, %v421
    %v423 = vrot.slane %v422, 2
    %v424 = vadd.f32 %v422, %v423
    %v425 = vrot.slane %v424, 1
    %v426 = vadd.f32 %v424, %v425
    %v427 = vtanh.pop %v426
    %428 = vst [vmem:[#allocation2] sm:$0x1] %v427
    // Predicated region
    $region26: #{tpu_custom_call.1} parent=1 // pred_check
      _
    $region27: #{tpu_custom_call.1} parent=1 // pred_check_branch
      %430 = sbr.rel (0) target = $region29
    $region28: #{tpu_custom_call.1} parent=1 // pred_region
      %s432 = ssub.s32 16, 16
      %433 = vsyncadd [#allocation3], %s432
      %s435 = sshll.u32 [#allocation2], 4
      %s436 = int_to_ptr.vmem [resolvable:$true] %s435
      %438 = dma.vmem_to_hbm [thread:$0]  %s436, 16, %s6, [#allocation3]
    $region29: #{tpu_custom_call.1} parent=1 // pred_fallthru
      _
    // Predicated region
    $region30: #{tpu_custom_call.1} parent=1 // pred_check
      _
    $region31: #{tpu_custom_call.1} parent=1 // pred_check_branch
      %440 = sbr.rel (0) target = $region33
    $region32: #{tpu_custom_call.1} parent=1 // pred_region
      %441 = dma.done [#allocation3], 16
    $region33: #{tpu_custom_call.1} parent=1 // pred_fallthru
      _
    %442 = vsyncpa [#allocation3], 1

</llo_original>
